<compile_context>
chip_gen: v5e
topology: v5e:2x2
jax: 0.10.0
libtpu: 0.0.40
codegen_flags: <defaults>
</compile_context>

<pallas_src>
import jax
import jax.numpy as jnp
from jax.experimental import pallas as pl
from jax.experimental.pallas import tpu as pltpu


def _make_kl_partial_kernel(tb, valid_rows, needs_mask):
    """Builds the per-row-block partial-sum kernel (tb / row count are static)."""

    def kernel(mu1_ref, lv1_ref, mu2_ref, lv2_ref, out_ref):
        mu1 = mu1_ref[...].astype(jnp.float32)
        lv1 = lv1_ref[...].astype(jnp.float32)
        mu2 = mu2_ref[...].astype(jnp.float32)
        lv2 = lv2_ref[...].astype(jnp.float32)

        d12 = lv1 - lv2          # reused for exp(d12) and -d12 (saves a VALU sub)
        diff = mu1 - mu2
        # Per-element KL term WITHOUT the trailing "-1" (folded into epilogue):
        #   (lv2 - lv1) + exp(lv1 - lv2) + (mu1 - mu2)^2 * exp(-lv2)
        per = jnp.exp(d12) - d12 + diff * diff * jnp.exp(-lv2)

        if needs_mask:
            # The last block may extend past the real rows; that VMEM region is
            # garbage from the DMA's point of view, so zero it before reducing.
            row = (pl.program_id(0) * tb
                   + jax.lax.broadcasted_iota(jnp.int32, (per.shape[0], 1), 0))
            per = jnp.where(row < valid_rows, per, 0.0)

        block_sum = jnp.sum(per)
        # Broadcast into a natively tiled (8,128) tile -> unmasked stores.
        out_ref[...] = jnp.full(out_ref.shape, block_sum, jnp.float32)

    return kernel


def _hw_block_defaults():
    """(per-input block bytes, vmem_limit_bytes) tuned per TPU generation."""
    block_bytes, vmem_limit = 2 << 20, 32 << 20          # conservative default
    try:
        vmem = int(getattr(pltpu.get_tpu_info(), "vmem_capacity_bytes", 0))
        if vmem >= (96 << 20):       # v5e / v6e: 128 MiB VMEM per core
            block_bytes, vmem_limit = 4 << 20, 64 << 20
        elif vmem > 0:               # v7x-class: 64 MiB per TensorCore
            block_bytes, vmem_limit = 2 << 20, 40 << 20
    except Exception:                # unknown target / interpret mode
        pass
    return block_bytes, vmem_limit


def _gaussian_kl_plain(mu1, logvar1, mu2, logvar2):
    """Fused-XLA fast path (also the VMEM-overflow fallback)."""
    mu1, logvar1, mu2, logvar2 = (
        x.astype(jnp.float32) for x in (mu1, logvar1, mu2, logvar2))
    frac = (jnp.exp(logvar1) + jnp.square(mu1 - mu2)) * jnp.exp(-logvar2)
    return jnp.mean(0.5 * jnp.sum(logvar2 - logvar1 + frac - 1.0, axis=1), axis=0)


def gaussian_kl_loss(mu1, logvar1, mu2, logvar2, *,
                     min_kernel_elems=1 << 16,
                     block_bytes=None, vmem_limit_bytes=None):
    if not (mu1.shape == logvar1.shape == mu2.shape == logvar2.shape):
        raise ValueError("all four inputs must share the same shape")
    if mu1.ndim != 2:
        # PyTorch's .sum(dim=1).mean(dim=0) only yields a scalar for 2-D input.
        raise ValueError("gaussian_kl_loss expects 2-D (batch, dim) inputs")

    B, D = map(int, mu1.shape)
    n = B * D

    # Small inputs: launch + single-block overhead dominates; plain XLA wins.
    if n < min_kernel_elems:
        return _gaussian_kl_plain(mu1, logvar1, mu2, logvar2)

    hw_block, hw_limit = _hw_block_defaults()
    block_bytes = hw_block if block_bytes is None else block_bytes
    vmem_limit_bytes = hw_limit if vmem_limit_bytes is None else vmem_limit_bytes

    max_itemsize = max(jnp.dtype(x.dtype).itemsize
                       for x in (mu1, logvar1, mu2, logvar2))

    # Row-block size: sublane granularity 16 (keeps bf16 packing dense), capped
    # by the per-input VMEM budget and by the row count (no pad, no reshape).
    if B < 8:
        tb = B                                    # block == full rows (allowed)
    else:
        gran = 16 if B >= 16 else 8
        budget_rows = max(1, block_bytes // (D * max_itemsize))
        tb = max(gran, (min(budget_rows, B) // gran) * gran)
        # Keep >= 2 grid steps so the v7x megacore ("parallel" axis) has work.
        if B >= 2 * gran and -(-B // tb) < 2:
            tb = max(gran, (((B + 1) // 2) // gran) * gran)

    # 4 inputs x 2 pipeline buffers of (tb, D) must fit VMEM comfortably.
    if 8 * tb * D * max_itemsize > vmem_limit_bytes - (4 << 20):
        # TODO(synk): add a second grid axis over the feature dim for huge D.
        return _gaussian_kl_plain(mu1, logvar1, mu2, logvar2)

    num_blocks = -(-B // tb)
    needs_mask = (B % tb) != 0

    in_spec = pl.BlockSpec((tb, D), lambda i: (i, 0))
    partials = pl.pallas_call(
        _make_kl_partial_kernel(tb, B, needs_mask),
        out_shape=jax.ShapeDtypeStruct((num_blocks, 8, 128), jnp.float32),
        grid=(num_blocks,),
        in_specs=[in_spec, in_spec, in_spec, in_spec],
        out_specs=pl.BlockSpec((1, 8, 128), lambda i: (i, 0, 0)),
        compiler_params=pltpu.CompilerParams(
            dimension_semantics=("parallel",),
            vmem_limit_bytes=vmem_limit_bytes,
        ),
    )(mu1, logvar1, mu2, logvar2)

    # Every lane of each (8,128) tile holds that block's sum -> one contiguous
    # reduce then /1024 (no strided gather).  The per-element "-1" was folded
    # out of the kernel: subtract the true element count n here.
    total = jnp.sum(partials) * (1.0 / (8 * 128))
    return 0.5 * (total - float(n)) / float(B)


def _reference(mu1, logvar1, mu2, logvar2):
    mu1, logvar1, mu2, logvar2 = (
        x.astype(jnp.float32) for x in (mu1, logvar1, mu2, logvar2))
    numerator = jnp.exp(logvar1) + jnp.square(mu1 - mu2)
    fraction = numerator / jnp.exp(logvar2)
    return jnp.mean(0.5 * jnp.sum(logvar2 - logvar1 + fraction - 1.0, axis=1), axis=0)


if __name__ == "__main__":
    key = jax.random.PRNGKey(0)
    k1, k2, k3, k4 = jax.random.split(key, 4)

    # 1) Module-scale small input -> fused-XLA fast path.
    B, D = 8, 32
    mu1 = jax.random.normal(k1, (B, D), jnp.float32)
    lv1 = jax.random.normal(k2, (B, D), jnp.float32) * 0.1
    mu2 = jax.random.normal(k3, (B, D), jnp.float32)
    lv2 = jax.random.normal(k4, (B, D), jnp.float32) * 0.1
    out = jax.block_until_ready(gaussian_kl_loss(mu1, lv1, mu2, lv2))
    ref = _reference(mu1, lv1, mu2, lv2)
    assert jnp.allclose(out, ref, rtol=1e-5, atol=1e-5), (out, ref)

    # 2) Pallas path: lane-aligned D, multi-block parallel grid, f32 inputs.
    B, D = 64, 512
    mu1 = jax.random.normal(k1, (B, D), jnp.float32)
    lv1 = jax.random.normal(k2, (B, D), jnp.float32) * 0.1
    mu2 = jax.random.normal(k3, (B, D), jnp.float32)
    lv2 = jax.random.normal(k4, (B, D), jnp.float32) * 0.1
    out = jax.block_until_ready(
        gaussian_kl_loss(mu1, lv1, mu2, lv2, min_kernel_elems=0))
    ref = _reference(mu1, lv1, mu2, lv2)
    assert jnp.allclose(out, ref, rtol=1e-4, atol=1e-4), (out, ref)

    # 3) Pallas path: non-128-aligned D, masked tail row block, bf16 inputs.
    B, D = 40, 200
    mu1 = jax.random.normal(k1, (B, D), jnp.float32).astype(jnp.bfloat16)
    lv1 = (jax.random.normal(k2, (B, D), jnp.float32) * 0.1).astype(jnp.bfloat16)
    mu2 = jax.random.normal(k3, (B, D), jnp.float32).astype(jnp.bfloat16)
    lv2 = (jax.random.normal(k4, (B, D), jnp.float32) * 0.1).astype(jnp.bfloat16)
    out = jax.block_until_ready(
        gaussian_kl_loss(mu1, lv1, mu2, lv2, min_kernel_elems=0))
    ref = _reference(mu1, lv1, mu2, lv2)
    assert jnp.allclose(out, ref, rtol=1e-4, atol=1e-3), (out, ref)

    print("KERNEL_OK")
</pallas_src>

<mosaic_0001>
module attributes {stable_mosaic.version = 11 : i64} {
  func.func @kernel(%arg0: i32, %arg1: memref<32x512xf32, #tpu.memory_space<vmem>>, %arg2: memref<32x512xf32, #tpu.memory_space<vmem>>, %arg3: memref<32x512xf32, #tpu.memory_space<vmem>>, %arg4: memref<32x512xf32, #tpu.memory_space<vmem>>, %arg5: memref<1x8x128xf32, #tpu.memory_space<vmem>>) attributes {dimension_semantics = [#tpu.dimension_semantics<parallel>], iteration_bounds = array<i64: 2>, scalar_prefetch = 0 : i64, scratch_operands = 0 : i64, tpu.core_type = #tpu.core_type<tc>, window_params = [{transform_indices = @transform_0, window_bounds = array<i64: 32, 512>}, {transform_indices = @transform_1, window_bounds = array<i64: 32, 512>}, {transform_indices = @transform_2, window_bounds = array<i64: 32, 512>}, {transform_indices = @transform_3, window_bounds = array<i64: 32, 512>}, {transform_indices = @transform_4, window_bounds = array<i64: 1, 8, 128>}]} {
    %c0 = arith.constant 0 : index
    %c0_0 = arith.constant 0 : index
    %0 = vector.load %arg1[%c0, %c0_0] : memref<32x512xf32, #tpu.memory_space<vmem>>, vector<32x512xf32>
    %c0_1 = arith.constant 0 : index
    %c0_2 = arith.constant 0 : index
    %1 = vector.load %arg2[%c0_1, %c0_2] : memref<32x512xf32, #tpu.memory_space<vmem>>, vector<32x512xf32>
    %c0_3 = arith.constant 0 : index
    %c0_4 = arith.constant 0 : index
    %2 = vector.load %arg3[%c0_3, %c0_4] : memref<32x512xf32, #tpu.memory_space<vmem>>, vector<32x512xf32>
    %c0_5 = arith.constant 0 : index
    %c0_6 = arith.constant 0 : index
    %3 = vector.load %arg4[%c0_5, %c0_6] : memref<32x512xf32, #tpu.memory_space<vmem>>, vector<32x512xf32>
    %4 = arith.subf %1, %3 : vector<32x512xf32>
    %5 = arith.subf %0, %2 : vector<32x512xf32>
    %6 = math.exp %4 : vector<32x512xf32>
    %7 = arith.subf %6, %4 : vector<32x512xf32>
    %8 = arith.mulf %5, %5 : vector<32x512xf32>
    %cst = arith.constant 0.000000e+00 : f32
    %9 = vector.broadcast %cst : f32 to vector<32x512xf32>
    %10 = arith.subf %9, %3 : vector<32x512xf32>
    %11 = math.exp %10 : vector<32x512xf32>
    %12 = arith.mulf %8, %11 : vector<32x512xf32>
    %13 = arith.addf %7, %12 : vector<32x512xf32>
    %14 = vector.shape_cast %13 : vector<32x512xf32> to vector<1x32x512xf32>
    %cst_7 = arith.constant dense<0.000000e+00> : vector<1xf32>
    %15 = vector.multi_reduction <add>, %14, %cst_7 [1, 2] : vector<1x32x512xf32> to vector<1xf32>
    %16 = vector.shape_cast %15 : vector<1xf32> to vector<1x1x1xf32>
    %17 = vector.extract %16[0, 0, 0] : f32 from vector<1x1x1xf32>
    %18 = vector.broadcast %17 : f32 to vector<1x8x128xf32>
    %c0_8 = arith.constant 0 : index
    %c0_9 = arith.constant 0 : index
    %c0_10 = arith.constant 0 : index
    %19 = vector.load %arg5[%c0_8, %c0_9, %c0_10] : memref<1x8x128xf32, #tpu.memory_space<vmem>>, vector<1x8x128xf32>
    tpu.vector_store %arg5[%c0_8, %c0_9, %c0_10], %18 {strides = array<i32>} : memref<1x8x128xf32, #tpu.memory_space<vmem>>, vector<1x8x128xf32>,
    return
  }
  func.func @transform_0(%arg0: i32) -> (i32, i32) {
    %c0_i32 = arith.constant 0 : i32
    %c0_i32_0 = arith.constant 0 : i32
    return %arg0, %c0_i32 : i32, i32
  }
  func.func @transform_1(%arg0: i32) -> (i32, i32) {
    %c0_i32 = arith.constant 0 : i32
    %c0_i32_0 = arith.constant 0 : i32
    return %arg0, %c0_i32 : i32, i32
  }
  func.func @transform_2(%arg0: i32) -> (i32, i32) {
    %c0_i32 = arith.constant 0 : i32
    %c0_i32_0 = arith.constant 0 : i32
    return %arg0, %c0_i32 : i32, i32
  }
  func.func @transform_3(%arg0: i32) -> (i32, i32) {
    %c0_i32 = arith.constant 0 : i32
    %c0_i32_0 = arith.constant 0 : i32
    return %arg0, %c0_i32 : i32, i32
  }
  func.func @transform_4(%arg0: i32) -> (i32, i32, i32) {
    %c0_i32 = arith.constant 0 : i32
    %c0_i32_0 = arith.constant 0 : i32
    %c0_i32_1 = arith.constant 0 : i32
    return %arg0, %c0_i32, %c0_i32_0 : i32, i32, i32
  }
}

</mosaic_0001>

<llo_original>
// kernel: tpu_custom_call.1
$region0: #{tpu_custom_call.1}
  #allocation0 [shape = 'u32[]', space=smem, size = 0x4, offset = 0x4, fixed_abs, tag = 'smem constant byte address 0x4 - core index']
  #allocation1 [shape = 'u32[72,128]{1,0:T(1,128)}', space=vmem, size = 0x9000, scoped, tag = 'internal scratch']
  %s0 = inlined_call_operand.hbm [shape: f32[64,512], index: 0, kind: input, shape index: {}]
  %s1 = inlined_call_operand.hbm [shape: f32[64,512], index: 1, kind: input, shape index: {}]
  %s2 = inlined_call_operand.hbm [shape: f32[64,512], index: 2, kind: input, shape index: {}]
  %s3 = inlined_call_operand.hbm [shape: f32[64,512], index: 3, kind: input, shape index: {}]
  %s4 = inlined_call_operand.hbm [shape: f32[2,8,128], index: 4, kind: output, shape index: {}]
  %s5 = sld [smem:[#allocation0]]
  $region65: #{tpu_custom_call.1} parent=0
    _
  %s7 = ssub.s32 1, %s5
  %s8 = scalar_select 0, %s7, %s5
  $region1: #{tpu_custom_call.1} parent=0
    #allocation2 [shape = 'u8[131072]{0}', space=vmem, size = 0x20000, scoped, tag = 'input window, operand 0']
    #allocation3 [shape = 's32[2]{0}', space=sflag, size = 0x8, scoped, tag = 'scoped memory for tpu_custom_call.1']
    #allocation4 [shape = 's32[2]{0}', space=sflag, size = 0x8, scoped, tag = 'scoped memory for tpu_custom_call.1']
    #allocation5 [shape = 'u8[131072]{0}', space=vmem, size = 0x20000, scoped, tag = 'input window, operand 1']
    #allocation6 [shape = 's32[2]{0}', space=sflag, size = 0x8, scoped, tag = 'scoped memory for tpu_custom_call.1']
    #allocation7 [shape = 'u8[131072]{0}', space=vmem, size = 0x20000, scoped, tag = 'input window, operand 2']
    #allocation8 [shape = 'u8[131072]{0}', space=vmem, size = 0x20000, scoped, tag = 'input window, operand 3']
    #allocation9 [shape = 's32[2]{0}', space=sflag, size = 0x8, scoped, tag = 'scoped memory for tpu_custom_call.1']
    #allocation10 [shape = 'u8[8192]{0}', space=vmem, size = 0x2000, scoped, tag = 'output window, operand 0']
    %9 = vsyncpa [#allocation3], 0
    %s10 = scalar_lea.sflag [#allocation3], 1
    %11 = vsyncpa %s10, 0
    %12 = vsyncpa [#allocation6], 0
    %s13 = scalar_lea.sflag [#allocation6], 1
    %14 = vsyncpa %s13, 0
    %15 = vsyncpa [#allocation9], 0
    %s16 = scalar_lea.sflag [#allocation9], 1
    %17 = vsyncpa %s16, 0
    %18 = vsyncpa [#allocation4], 0
    %s19 = scalar_lea.sflag [#allocation4], 1
    %20 = vsyncpa %s19, 0
    loop: start=0, step=1, limit=4
    $region2: #{tpu_custom_call.1} parent=1 // loop_pre_header
      _
    $region3: #{tpu_custom_call.1} parent=1 // loop_header
      %s22 = sphi 0, %s26
      %p23 = scmp.ge.s32.totalorder %s22, 4
      %s32 = sphi 0, %s34
      %s35 = sphi 0, %s32
      %s36 = sphi 0, %s35
      %s52 = sphi 0, %s36
      %s58 = sphi 0, %s60
      %s61 = sphi 0, %s58
      %s62 = sphi 0, %s61
      %s78 = sphi 0, %s62
      %s84 = sphi 0, %s86
      %s87 = sphi 0, %s84
      %s88 = sphi 0, %s87
      %s104 = sphi 0, %s88
      %s110 = sphi 0, %s112
      %s113 = sphi 0, %s110
      %s114 = sphi 0, %s113
      %s130 = sphi 0, %s114
      %s136 = sphi 0, %s138
      %s139 = sphi 0, %s136
      %s140 = sphi 0, %s139
      %s156 = sphi 0, %s140
    $region4: #{tpu_custom_call.1} parent=1 // loop_header_branch
      %25 = sbr.rel (%p23) target = $region8
    $region5: #{tpu_custom_call.1} parent=1 // loop_body
      %s27 = ssub.s32 %s22, 1
      %s28 = ssub.s32 %s22, 2
      %s29 = sadd.s32 %s22, 1
      %s30 = ssub.s32 %s22, %s29
      %p31 = scmp.eq.s32.totalorder %s30, 0
      %s33 = sadd.s32 %s32, 1
      %s34 = scalar_select %p31, %s32, %s33
      %p37 = pneg %p31
      %p38 = scmp.eq.s32.totalorder %s22, 1
      %p39 = por %p37, %p38
      %p40 = scmp.ne.s32.totalorder %s32, %s35
      %p41 = scmp.eq.s32.totalorder %s22, 0
      %p42 = por %p40, %p41
      %p43 = scmp.ne.s32.totalorder %s32, %s35
      %p44 = scmp.eq.s32.totalorder %s27, 1
      %p45 = por %p43, %p44
      %p46 = scmp.ne.s32.totalorder %s35, %s36
      %p47 = scmp.eq.s32.totalorder %s27, 0
      %p48 = por %p46, %p47
      %p49 = scmp.ne.s32.totalorder %s35, %s36
      %p50 = scmp.eq.s32.totalorder %s28, 1
      %p51 = por %p49, %p50
      %p53 = scmp.ne.s32.totalorder %s36, %s52
      %p54 = scmp.eq.s32.totalorder %s28, 0
      %p55 = por %p53, %p54
      %s56 = ssub.s32 %s22, %s29
      %p57 = scmp.eq.s32.totalorder %s56, 0
      %s59 = sadd.s32 %s58, 1
      %s60 = scalar_select %p57, %s58, %s59
      %p63 = pneg %p57
      %p64 = scmp.eq.s32.totalorder %s22, 1
      %p65 = por %p63, %p64
      %p66 = scmp.ne.s32.totalorder %s58, %s61
      %p67 = scmp.eq.s32.totalorder %s22, 0
      %p68 = por %p66, %p67
      %p69 = scmp.ne.s32.totalorder %s58, %s61
      %p70 = scmp.eq.s32.totalorder %s27, 1
      %p71 = por %p69, %p70
      %p72 = scmp.ne.s32.totalorder %s61, %s62
      %p73 = scmp.eq.s32.totalorder %s27, 0
      %p74 = por %p72, %p73
      %p75 = scmp.ne.s32.totalorder %s61, %s62
      %p76 = scmp.eq.s32.totalorder %s28, 1
      %p77 = por %p75, %p76
      %p79 = scmp.ne.s32.totalorder %s62, %s78
      %p80 = scmp.eq.s32.totalorder %s28, 0
      %p81 = por %p79, %p80
      %s82 = ssub.s32 %s22, %s29
      %p83 = scmp.eq.s32.totalorder %s82, 0
      %s85 = sadd.s32 %s84, 1
      %s86 = scalar_select %p83, %s84, %s85
      %p89 = pneg %p83
      %p90 = scmp.eq.s32.totalorder %s22, 1
      %p91 = por %p89, %p90
      %p92 = scmp.ne.s32.totalorder %s84, %s87
      %p93 = scmp.eq.s32.totalorder %s22, 0
      %p94 = por %p92, %p93
      %p95 = scmp.ne.s32.totalorder %s84, %s87
      %p96 = scmp.eq.s32.totalorder %s27, 1
      %p97 = por %p95, %p96
      %p98 = scmp.ne.s32.totalorder %s87, %s88
      %p99 = scmp.eq.s32.totalorder %s27, 0
      %p100 = por %p98, %p99
      %p101 = scmp.ne.s32.totalorder %s87, %s88
      %p102 = scmp.eq.s32.totalorder %s28, 1
      %p103 = por %p101, %p102
      %p105 = scmp.ne.s32.totalorder %s88, %s104
      %p106 = scmp.eq.s32.totalorder %s28, 0
      %p107 = por %p105, %p106
      %s108 = ssub.s32 %s22, %s29
      %p109 = scmp.eq.s32.totalorder %s108, 0
      %s111 = sadd.s32 %s110, 1
      %s112 = scalar_select %p109, %s110, %s111
      %p115 = pneg %p109
      %p116 = scmp.eq.s32.totalorder %s22, 1
      %p117 = por %p115, %p116
      %p118 = scmp.ne.s32.totalorder %s110, %s113
      %p119 = scmp.eq.s32.totalorder %s22, 0
      %p120 = por %p118, %p119
      %p121 = scmp.ne.s32.totalorder %s110, %s113
      %p122 = scmp.eq.s32.totalorder %s27, 1
      %p123 = por %p121, %p122
      %p124 = scmp.ne.s32.totalorder %s113, %s114
      %p125 = scmp.eq.s32.totalorder %s27, 0
      %p126 = por %p124, %p125
      %p127 = scmp.ne.s32.totalorder %s113, %s114
      %p128 = scmp.eq.s32.totalorder %s28, 1
      %p129 = por %p127, %p128
      %p131 = scmp.ne.s32.totalorder %s114, %s130
      %p132 = scmp.eq.s32.totalorder %s28, 0
      %p133 = por %p131, %p132
      %s134 = ssub.s32 %s22, %s29
      %p135 = scmp.eq.s32.totalorder %s134, 0
      %s137 = sadd.s32 %s136, 1
      %s138 = scalar_select %p135, %s136, %s137
      %p141 = pneg %p135
      %p142 = scmp.eq.s32.totalorder %s22, 1
      %p143 = por %p141, %p142
      %p144 = scmp.ne.s32.totalorder %s136, %s139
      %p145 = scmp.eq.s32.totalorder %s22, 0
      %p146 = por %p144, %p145
      %p147 = scmp.ne.s32.totalorder %s136, %s139
      %p148 = scmp.eq.s32.totalorder %s27, 1
      %p149 = por %p147, %p148
      %p150 = scmp.ne.s32.totalorder %s139, %s140
      %p151 = scmp.eq.s32.totalorder %s27, 0
      %p152 = por %p150, %p151
      %p153 = scmp.ne.s32.totalorder %s139, %s140
      %p154 = scmp.eq.s32.totalorder %s28, 1
      %p155 = por %p153, %p154
      %p157 = scmp.ne.s32.totalorder %s140, %s156
      %p158 = scmp.eq.s32.totalorder %s28, 0
      %p159 = por %p157, %p158
      %p160 = scmp.le.s32.totalorder 1, %s22
      %p161 = scmp.lt.s32.totalorder %s22, 3
      %p162 = pnand %p160, %p161
      %p163 = pneg %p162
      // Predicated region
      $region9: #{tpu_custom_call.1} parent=5 // pred_check
        _
      $region10: #{tpu_custom_call.1} parent=5 // pred_check_branch
        %165 = sbr.rel (%p162) target = $region12
      $region11: #{tpu_custom_call.1} parent=5 // pred_region
        %s166 = ssub.s32 %s22, 1
      $region12: #{tpu_custom_call.1} parent=5 // pred_fallthru
        _
      %p167 = scmp.lt.s32.totalorder %s22, 2
      // Predicated region
      $region13: #{tpu_custom_call.1} parent=5 // pred_check
        %p168 = pneg %p167
      $region14: #{tpu_custom_call.1} parent=5 // pred_check_branch
        %170 = sbr.rel (%p168) target = $region16
      $region15: #{tpu_custom_call.1} parent=5 // pred_region
        // Predicated region
        $region17: #{tpu_custom_call.1} parent=15 // pred_check
          %p171 = pneg %p42
        $region18: #{tpu_custom_call.1} parent=15 // pred_check_branch
          %173 = sbr.rel (%p171) target = $region20
        $region19: #{tpu_custom_call.1} parent=15 // pred_region
          %s174 = sand.u32 %s32, 1
          %s175 = scalar_lea.sflag [#allocation3], %s174
          %s176 = sand.u32 %s32, 1
          %s177 = smul.addr %s176, 128
          %s178 = scalar_lea.vmem [#allocation2], %s177
          %s179 = smul.u32 4, %s22
          %181 = vsyncadd %s175, 0
          %s182 = smul.addr %s179, 4
          %s183 = smul.addr %s182, 8
          %s184 = scalar_lea.hbm %s0, %s183
          %s185 = sshll.u32 %s184, 4
          %s186 = int_to_ptr.hbm [resolvable:$true] %s185
          %s187 = sshll.u32 %s178, 4
          %s188 = int_to_ptr.vmem [resolvable:$true] %s187
          %193 = dma.hbm_to_vmem [thread:$0]  %s186, 2048, %s188, %s175, 512, 512, 32
        $region20: #{tpu_custom_call.1} parent=15 // pred_fallthru
          _
        // Predicated region
        $region21: #{tpu_custom_call.1} parent=15 // pred_check
          %p194 = pneg %p68
        $region22: #{tpu_custom_call.1} parent=15 // pred_check_branch
          %196 = sbr.rel (%p194) target = $region24
        $region23: #{tpu_custom_call.1} parent=15 // pred_region
          %s197 = sand.u32 %s22, 1
          %s198 = scalar_lea.sflag [#allocation6], %s197
          %s199 = sand.u32 %s58, 1
          %s200 = smul.addr %s199, 128
          %s201 = scalar_lea.vmem [#allocation5], %s200
          %s202 = smul.u32 4, %s22
          %204 = vsyncadd %s198, 0
          %s205 = smul.addr %s202, 4
          %s206 = smul.addr %s205, 8
          %s207 = scalar_lea.hbm %s1, %s206
          %s208 = sshll.u32 %s207, 4
          %s209 = int_to_ptr.hbm [resolvable:$true] %s208
          %s210 = sshll.u32 %s201, 4
          %s211 = int_to_ptr.vmem [resolvable:$true] %s210
          %216 = dma.hbm_to_vmem [thread:$0]  %s209, 2048, %s211, %s198, 512, 512, 32
        $region24: #{tpu_custom_call.1} parent=15 // pred_fallthru
          _
        // Predicated region
        $region25: #{tpu_custom_call.1} parent=15 // pred_check
          %p217 = pneg %p94
        $region26: #{tpu_custom_call.1} parent=15 // pred_check_branch
          %219 = sbr.rel (%p217) target = $region28
        $region27: #{tpu_custom_call.1} parent=15 // pred_region
          %s220 = sand.u32 %s22, 1
          %s221 = scalar_lea.sflag [#allocation6], %s220
          %s222 = sand.u32 %s84, 1
          %s223 = smul.addr %s222, 128
          %s224 = scalar_lea.vmem [#allocation7], %s223
          %s225 = smul.u32 4, %s22
          %227 = vsyncadd %s221, 0
          %s228 = smul.addr %s225, 4
          %s229 = smul.addr %s228, 8
          %s230 = scalar_lea.hbm %s2, %s229
          %s231 = sshll.u32 %s230, 4
          %s232 = int_to_ptr.hbm [resolvable:$true] %s231
          %s233 = sshll.u32 %s224, 4
          %s234 = int_to_ptr.vmem [resolvable:$true] %s233
          %239 = dma.hbm_to_vmem [thread:$0]  %s232, 2048, %s234, %s221, 512, 512, 32
        $region28: #{tpu_custom_call.1} parent=15 // pred_fallthru
          _
        // Predicated region
        $region29: #{tpu_custom_call.1} parent=15 // pred_check
          %p240 = pneg %p120
        $region30: #{tpu_custom_call.1} parent=15 // pred_check_branch
          %242 = sbr.rel (%p240) target = $region32
        $region31: #{tpu_custom_call.1} parent=15 // pred_region
          %s243 = sand.u32 %s110, 1
          %s244 = scalar_lea.sflag [#allocation9], %s243
          %s245 = sand.u32 %s110, 1
          %s246 = smul.addr %s245, 128
          %s247 = scalar_lea.vmem [#allocation8], %s246
          %s248 = smul.u32 4, %s22
          %250 = vsyncadd %s244, 0
          %s251 = smul.addr %s248, 4
          %s252 = smul.addr %s251, 8
          %s253 = scalar_lea.hbm %s3, %s252
          %s254 = sshll.u32 %s253, 4
          %s255 = int_to_ptr.hbm [resolvable:$true] %s254
          %s256 = sshll.u32 %s247, 4
          %s257 = int_to_ptr.vmem [resolvable:$true] %s256
          %262 = dma.hbm_to_vmem [thread:$0]  %s255, 2048, %s257, %s244, 512, 512, 32
        $region32: #{tpu_custom_call.1} parent=15 // pred_fallthru
          _
      $region16: #{tpu_custom_call.1} parent=5 // pred_fallthru
        _
      %p263 = scmp.le.s32.totalorder 1, %s22
      %p264 = scmp.lt.s32.totalorder %s22, 3
      %p265 = pnand %p263, %p264
      %p266 = pneg %p265
      // Predicated region
      $region33: #{tpu_custom_call.1} parent=5 // pred_check
        _
      $region34: #{tpu_custom_call.1} parent=5 // pred_check_branch
        %268 = sbr.rel (%p265) target = $region36
      $region35: #{tpu_custom_call.1} parent=5 // pred_region
        %s269 = ssub.s32 %s22, 1
        %s270 = sand.u32 %s35, 1
        %s271 = scalar_lea.sflag [#allocation3], %s270
        %s272 = sand.u32 %s35, 1
        %s273 = smul.addr %s272, 128
        %s274 = scalar_lea.vmem [#allocation2], %s273
        // Predicated region
        $region37: #{tpu_custom_call.1} parent=35 // pred_check
          %p275 = pneg %p48
        $region38: #{tpu_custom_call.1} parent=35 // pred_check_branch
          %277 = sbr.rel (%p275) target = $region40
        $region39: #{tpu_custom_call.1} parent=35 // pred_region
          %279 = dma.done %s271, 2048
        $region40: #{tpu_custom_call.1} parent=35 // pred_fallthru
          _
        %s280 = sand.u32 %s27, 1
        %s281 = scalar_lea.sflag [#allocation6], %s280
        %s282 = sand.u32 %s61, 1
        %s283 = smul.addr %s282, 128
        %s284 = scalar_lea.vmem [#allocation5], %s283
        // Predicated region
        $region41: #{tpu_custom_call.1} parent=35 // pred_check
          %p285 = pneg %p74
        $region42: #{tpu_custom_call.1} parent=35 // pred_check_branch
          %287 = sbr.rel (%p285) target = $region44
        $region43: #{tpu_custom_call.1} parent=35 // pred_region
          %289 = dma.done %s281, 2048
        $region44: #{tpu_custom_call.1} parent=35 // pred_fallthru
          _
        %s290 = sand.u32 %s27, 1
        %s291 = scalar_lea.sflag [#allocation6], %s290
        %s292 = sand.u32 %s87, 1
        %s293 = smul.addr %s292, 128
        %s294 = scalar_lea.vmem [#allocation7], %s293
        // Predicated region
        $region45: #{tpu_custom_call.1} parent=35 // pred_check
          %p295 = pneg %p100
        $region46: #{tpu_custom_call.1} parent=35 // pred_check_branch
          %297 = sbr.rel (%p295) target = $region48
        $region47: #{tpu_custom_call.1} parent=35 // pred_region
          %299 = dma.done %s291, 2048
        $region48: #{tpu_custom_call.1} parent=35 // pred_fallthru
          _
        %s300 = sand.u32 %s113, 1
        %s301 = scalar_lea.sflag [#allocation9], %s300
        %s302 = sand.u32 %s113, 1
        %s303 = smul.addr %s302, 128
        %s304 = scalar_lea.vmem [#allocation8], %s303
        // Predicated region
        $region49: #{tpu_custom_call.1} parent=35 // pred_check
          %p305 = pneg %p126
        $region50: #{tpu_custom_call.1} parent=35 // pred_check_branch
          %307 = sbr.rel (%p305) target = $region52
        $region51: #{tpu_custom_call.1} parent=35 // pred_region
          %309 = dma.done %s301, 2048
        $region52: #{tpu_custom_call.1} parent=35 // pred_fallthru
          _
        %s310 = sand.u32 %s35, 1
        %s311 = scalar_lea.sflag [#allocation3], %s310
        %s312 = sand.u32 %s35, 1
        %s313 = smul.addr %s312, 128
        %s314 = scalar_lea.vmem [#allocation2], %s313
        %p315 = pneg %p48
        %p316 = pneg %p45
        %s317 = sand.u32 %s27, 1
        %s318 = scalar_lea.sflag [#allocation6], %s317
        %s319 = sand.u32 %s61, 1
        %s320 = smul.addr %s319, 128
        %s321 = scalar_lea.vmem [#allocation5], %s320
        %p322 = pneg %p74
        %p323 = pneg %p71
        %s324 = sand.u32 %s27, 1
        %s325 = scalar_lea.sflag [#allocation6], %s324
        %s326 = sand.u32 %s87, 1
        %s327 = smul.addr %s326, 128
        %s328 = scalar_lea.vmem [#allocation7], %s327
        %p329 = pneg %p100
        %p330 = pneg %p97
        %s331 = sand.u32 %s113, 1
        %s332 = scalar_lea.sflag [#allocation9], %s331
        %s333 = sand.u32 %s113, 1
        %s334 = smul.addr %s333, 128
        %s335 = scalar_lea.vmem [#allocation8], %s334
        %p336 = pneg %p126
        %p337 = pneg %p123
        %p338 = pneg %p152
        %p339 = pneg %p149
        %s340 = sand.u32 %s139, 1
        %s341 = scalar_lea.sflag [#allocation4], %s340
        %s342 = sand.u32 %s139, 1
        %s343 = smul.addr %s342, 8
        %s344 = scalar_lea.vmem [#allocation10], %s343
        %s345 = smul.u32 4, %s27
        %s346 = smul.u32 4, %s27
        %s347 = smul.u32 4, %s27
        %s348 = smul.u32 4, %s27
        %v349 = vld [vmem:[%s274] sm:$0xff]
        %v350 = vld [vmem:[%s274 + $0x8] sm:$0xff]
        %v351 = vld [vmem:[%s274 + $0x10] sm:$0xff]
        %v352 = vld [vmem:[%s274 + $0x18] sm:$0xff]
        %v353 = vld [vmem:[%s274 + $0x20] sm:$0xff]
        %v354 = vld [vmem:[%s274 + $0x28] sm:$0xff]
        %v355 = vld [vmem:[%s274 + $0x30] sm:$0xff]
        %v356 = vld [vmem:[%s274 + $0x38] sm:$0xff]
        %v357 = vld [vmem:[%s274 + $0x40] sm:$0xff]
        %v358 = vld [vmem:[%s274 + $0x48] sm:$0xff]
        %v359 = vld [vmem:[%s274 + $0x50] sm:$0xff]
        %v360 = vld [vmem:[%s274 + $0x58] sm:$0xff]
        %v361 = vld [vmem:[%s274 + $0x60] sm:$0xff]
        %v362 = vld [vmem:[%s274 + $0x68] sm:$0xff]
        %v363 = vld [vmem:[%s274 + $0x70] sm:$0xff]
        %v364 = vld [vmem:[%s274 + $0x78] sm:$0xff]
        %v365 = vld [vmem:[%s284] sm:$0xff]
        %v366 = vld [vmem:[%s284 + $0x8] sm:$0xff]
        %v367 = vld [vmem:[%s284 + $0x10] sm:$0xff]
        %v368 = vld [vmem:[%s284 + $0x18] sm:$0xff]
        %v369 = vld [vmem:[%s284 + $0x20] sm:$0xff]
        %v370 = vld [vmem:[%s284 + $0x28] sm:$0xff]
        %v371 = vld [vmem:[%s284 + $0x30] sm:$0xff]
        %v372 = vld [vmem:[%s284 + $0x38] sm:$0xff]
        %v373 = vld [vmem:[%s284 + $0x40] sm:$0xff]
        %v374 = vld [vmem:[%s284 + $0x48] sm:$0xff]
        %v375 = vld [vmem:[%s284 + $0x50] sm:$0xff]
        %v376 = vld [vmem:[%s284 + $0x58] sm:$0xff]
        %v377 = vld [vmem:[%s284 + $0x60] sm:$0xff]
        %v378 = vld [vmem:[%s284 + $0x68] sm:$0xff]
        %v379 = vld [vmem:[%s284 + $0x70] sm:$0xff]
        %v380 = vld [vmem:[%s284 + $0x78] sm:$0xff]
        %v381 = vld [vmem:[%s294] sm:$0xff]
        %v382 = vld [vmem:[%s294 + $0x8] sm:$0xff]
        %v383 = vld [vmem:[%s294 + $0x10] sm:$0xff]
        %v384 = vld [vmem:[%s294 + $0x18] sm:$0xff]
        %v385 = vld [vmem:[%s294 + $0x20] sm:$0xff]
        %v386 = vld [vmem:[%s294 + $0x28] sm:$0xff]
        %v387 = vld [vmem:[%s294 + $0x30] sm:$0xff]
        %v388 = vld [vmem:[%s294 + $0x38] sm:$0xff]
        %v389 = vld [vmem:[%s294 + $0x40] sm:$0xff]
        %v390 = vld [vmem:[%s294 + $0x48] sm:$0xff]
        %v391 = vld [vmem:[%s294 + $0x50] sm:$0xff]
        %v392 = vld [vmem:[%s294 + $0x58] sm:$0xff]
        %v393 = vld [vmem:[%s294 + $0x60] sm:$0xff]
        %v394 = vld [vmem:[%s294 + $0x68] sm:$0xff]
        %v395 = vld [vmem:[%s294 + $0x70] sm:$0xff]
        %v396 = vld [vmem:[%s294 + $0x78] sm:$0xff]
        %v397 = vld [vmem:[%s304] sm:$0xff]
        %v398 = vld [vmem:[%s304 + $0x8] sm:$0xff]
        %v399 = vld [vmem:[%s304 + $0x10] sm:$0xff]
        %v400 = vld [vmem:[%s304 + $0x18] sm:$0xff]
        %v401 = vld [vmem:[%s304 + $0x20] sm:$0xff]
        %v402 = vld [vmem:[%s304 + $0x28] sm:$0xff]
        %v403 = vld [vmem:[%s304 + $0x30] sm:$0xff]
        %v404 = vld [vmem:[%s304 + $0x38] sm:$0xff]
        %v405 = vld [vmem:[%s304 + $0x40] sm:$0xff]
        %v406 = vld [vmem:[%s304 + $0x48] sm:$0xff]
        %v407 = vld [vmem:[%s304 + $0x50] sm:$0xff]
        %v408 = vld [vmem:[%s304 + $0x58] sm:$0xff]
        %v409 = vld [vmem:[%s304 + $0x60] sm:$0xff]
        %v410 = vld [vmem:[%s304 + $0x68] sm:$0xff]
        %v411 = vld [vmem:[%s304 + $0x70] sm:$0xff]
        %v412 = vld [vmem:[%s304 + $0x78] sm:$0xff]
        %v413 = vsub.f32 %v365, %v397
        %v414 = vsub.f32 %v366, %v398
        %v415 = vsub.f32 %v367, %v399
        %v416 = vsub.f32 %v368, %v400
        %v417 = vsub.f32 %v369, %v401
        %v418 = vsub.f32 %v370, %v402
        %v419 = vsub.f32 %v371, %v403
        %v420 = vsub.f32 %v372, %v404
        %v421 = vsub.f32 %v373, %v405
        %v422 = vsub.f32 %v374, %v406
        %v423 = vsub.f32 %v375, %v407
        %v424 = vsub.f32 %v376, %v408
        %v425 = vsub.f32 %v377, %v409
        %v426 = vsub.f32 %v378, %v410
        %v427 = vsub.f32 %v379, %v411
        %v428 = vsub.f32 %v380, %v412
        %v429 = vsub.f32 %v349, %v381
        %v430 = vsub.f32 %v350, %v382
        %v431 = vsub.f32 %v351, %v383
        %v432 = vsub.f32 %v352, %v384
        %v433 = vsub.f32 %v353, %v385
        %v434 = vsub.f32 %v354, %v386
        %v435 = vsub.f32 %v355, %v387
        %v436 = vsub.f32 %v356, %v388
        %v437 = vsub.f32 %v357, %v389
        %v438 = vsub.f32 %v358, %v390
        %v439 = vsub.f32 %v359, %v391
        %v440 = vsub.f32 %v360, %v392
        %v441 = vsub.f32 %v361, %v393
        %v442 = vsub.f32 %v362, %v394
        %v443 = vsub.f32 %v363, %v395
        %v444 = vsub.f32 %v364, %v396
        %v445 = vmul.f32 %v413, 1.442695
        %v446 = vpow.pop %v445
        %v447 = vmul.f32 %v414, 1.442695
        %v448 = vpow.pop %v447
        %v449 = vmul.f32 %v415, 1.442695
        %v450 = vpow.pop %v449
        %v451 = vmul.f32 %v416, 1.442695
        %v452 = vpow.pop %v451
        %v453 = vmul.f32 %v417, 1.442695
        %v454 = vpow.pop %v453
        %v455 = vmul.f32 %v418, 1.442695
        %v456 = vpow.pop %v455
        %v457 = vmul.f32 %v419, 1.442695
        %v458 = vpow.pop %v457
        %v459 = vmul.f32 %v420, 1.442695
        %v460 = vpow.pop %v459
        %v461 = vmul.f32 %v421, 1.442695
        %v462 = vpow.pop %v461
        %v463 = vmul.f32 %v422, 1.442695
        %v464 = vpow.pop %v463
        %v465 = vmul.f32 %v423, 1.442695
        %v466 = vpow.pop %v465
        %v467 = vmul.f32 %v424, 1.442695
        %v468 = vpow.pop %v467
        %v469 = vmul.f32 %v425, 1.442695
        %v470 = vpow.pop %v469
        %v471 = vmul.f32 %v426, 1.442695
        %v472 = vpow.pop %v471
        %v473 = vmul.f32 %v427, 1.442695
        %v474 = vpow.pop %v473
        %v475 = vmul.f32 %v428, 1.442695
        %v476 = vpow.pop %v475
        %v477 = vsub.f32 %v446, %v413
        %v478 = vsub.f32 %v448, %v414
        %v479 = vsub.f32 %v450, %v415
        %v480 = vsub.f32 %v452, %v416
        %v481 = vsub.f32 %v454, %v417
        %v482 = vsub.f32 %v456, %v418
        %v483 = vsub.f32 %v458, %v419
        %v484 = vsub.f32 %v460, %v420
        %v485 = vsub.f32 %v462, %v421
        %v486 = vsub.f32 %v464, %v422
        %v487 = vsub.f32 %v466, %v423
        %v488 = vsub.f32 %v468, %v424
        %v489 = vsub.f32 %v470, %v425
        %v490 = vsub.f32 %v472, %v426
        %v491 = vsub.f32 %v474, %v427
        %v492 = vsub.f32 %v476, %v428
        %v493 = vmul.f32 %v429, %v429
        %v494 = vmul.f32 %v430, %v430
        %v495 = vmul.f32 %v431, %v431
        %v496 = vmul.f32 %v432, %v432
        %v497 = vmul.f32 %v433, %v433
        %v498 = vmul.f32 %v434, %v434
        %v499 = vmul.f32 %v435, %v435
        %v500 = vmul.f32 %v436, %v436
        %v501 = vmul.f32 %v437, %v437
        %v502 = vmul.f32 %v438, %v438
        %v503 = vmul.f32 %v439, %v439
        %v504 = vmul.f32 %v440, %v440
        %v505 = vmul.f32 %v441, %v441
        %v506 = vmul.f32 %v442, %v442
        %v507 = vmul.f32 %v443, %v443
        %v508 = vmul.f32 %v444, %v444
        %v509 = vsub.f32 0.0, %v397
        %v510 = vsub.f32 0.0, %v398
        %v511 = vsub.f32 0.0, %v399
        %v512 = vsub.f32 0.0, %v400
        %v513 = vsub.f32 0.0, %v401
        %v514 = vsub.f32 0.0, %v402
        %v515 = vsub.f32 0.0, %v403
        %v516 = vsub.f32 0.0, %v404
        %v517 = vsub.f32 0.0, %v405
        %v518 = vsub.f32 0.0, %v406
        %v519 = vsub.f32 0.0, %v407
        %v520 = vsub.f32 0.0, %v408
        %v521 = vsub.f32 0.0, %v409
        %v522 = vsub.f32 0.0, %v410
        %v523 = vsub.f32 0.0, %v411
        %v524 = vsub.f32 0.0, %v412
        %v525 = vmul.f32 %v509, 1.442695
        %v526 = vpow.pop %v525
        %v527 = vmul.f32 %v510, 1.442695
        %v528 = vpow.pop %v527
        %v529 = vmul.f32 %v511, 1.442695
        %v530 = vpow.pop %v529
        %v531 = vmul.f32 %v512, 1.442695
        %v532 = vpow.pop %v531
        %v533 = vmul.f32 %v513, 1.442695
        %v534 = vpow.pop %v533
        %v535 = vmul.f32 %v514, 1.442695
        %v536 = vpow.pop %v535
        %v537 = vmul.f32 %v515, 1.442695
        %v538 = vpow.pop %v537
        %v539 = vmul.f32 %v516, 1.442695
        %v540 = vpow.pop %v539
        %v541 = vmul.f32 %v517, 1.442695
        %v542 = vpow.pop %v541
        %v543 = vmul.f32 %v518, 1.442695
        %v544 = vpow.pop %v543
        %v545 = vmul.f32 %v519, 1.442695
        %v546 = vpow.pop %v545
        %v547 = vmul.f32 %v520, 1.442695
        %v548 = vpow.pop %v547
        %v549 = vmul.f32 %v521, 1.442695
        %v550 = vpow.pop %v549
        %v551 = vmul.f32 %v522, 1.442695
        %v552 = vpow.pop %v551
        %v553 = vmul.f32 %v523, 1.442695
        %v554 = vpow.pop %v553
        %v555 = vmul.f32 %v524, 1.442695
        %v556 = vpow.pop %v555
        %v557 = vmul.f32 %v493, %v526
        %v558 = vmul.f32 %v494, %v528
        %v559 = vmul.f32 %v495, %v530
        %v560 = vmul.f32 %v496, %v532
        %v561 = vmul.f32 %v497, %v534
        %v562 = vmul.f32 %v498, %v536
        %v563 = vmul.f32 %v499, %v538
        %v564 = vmul.f32 %v500, %v540
        %v565 = vmul.f32 %v501, %v542
        %v566 = vmul.f32 %v502, %v544
        %v567 = vmul.f32 %v503, %v546
        %v568 = vmul.f32 %v504, %v548
        %v569 = vmul.f32 %v505, %v550
        %v570 = vmul.f32 %v506, %v552
        %v571 = vmul.f32 %v507, %v554
        %v572 = vmul.f32 %v508, %v556
        %v573 = vadd.f32 %v477, %v557
        %v574 = vadd.f32 %v478, %v558
        %v575 = vadd.f32 %v479, %v559
        %v576 = vadd.f32 %v480, %v560
        %v577 = vadd.f32 %v481, %v561
        %v578 = vadd.f32 %v482, %v562
        %v579 = vadd.f32 %v483, %v563
        %v580 = vadd.f32 %v484, %v564
        %v581 = vadd.f32 %v485, %v565
        %v582 = vadd.f32 %v486, %v566
        %v583 = vadd.f32 %v487, %v567
        %v584 = vadd.f32 %v488, %v568
        %v585 = vadd.f32 %v489, %v569
        %v586 = vadd.f32 %v490, %v570
        %v587 = vadd.f32 %v491, %v571
        %v588 = vadd.f32 %v492, %v572
        %v589 = vadd.f32 %v573, %v574
        %v590 = vadd.f32 %v589, %v575
        %v591 = vadd.f32 %v590, %v576
        %v592 = vadd.f32 %v591, %v577
        %v593 = vadd.f32 %v592, %v578
        %v594 = vadd.f32 %v593, %v579
        %v595 = vadd.f32 %v594, %v580
        %v596 = vadd.f32 %v595, %v581
        %v597 = vadd.f32 %v596, %v582
        %v598 = vadd.f32 %v597, %v583
        %v599 = vadd.f32 %v598, %v584
        %v600 = vadd.f32 %v599, %v585
        %v601 = vadd.f32 %v600, %v586
        %v602 = vadd.f32 %v601, %v587
        %v603 = vadd.f32 %v602, %v588
        %604 = vadd.xlane.f32.xlu0 %v603
        %v605 = vpop.xlane.xlu0 %604
        %v606 = vrot.slane %v605, 4
        %v607 = vadd.f32 %v605, %v606
        %v608 = vrot.slane %v607, 2
        %v609 = vadd.f32 %v607, %v608
        %v610 = vrot.slane %v609, 1
        %v611 = vadd.f32 %v609, %v610
        %s612 = vtos %v611
        %v613 = vstv %s612
        %614 = vst [vmem:[%s344] sm:$0xff] %v613
        %s615 = sand.u32 %s139, 1
        %s616 = scalar_lea.sflag [#allocation4], %s615
        %s617 = sand.u32 %s139, 1
        %s618 = smul.addr %s617, 8
        %s619 = scalar_lea.vmem [#allocation10], %s618
        // Predicated region
        $region53: #{tpu_custom_call.1} parent=35 // pred_check
          %p620 = pneg %p149
        $region54: #{tpu_custom_call.1} parent=35 // pred_check_branch
          %622 = sbr.rel (%p620) target = $region56
        $region55: #{tpu_custom_call.1} parent=35 // pred_region
          %624 = vsyncadd %s616, 0
          %s625 = smul.addr %s27, 8
          %s626 = scalar_lea.hbm %s4, %s625
          %s628 = sshll.u32 %s619, 4
          %s629 = int_to_ptr.vmem [resolvable:$true] %s628
          %s630 = sshll.u32 %s626, 4
          %s631 = int_to_ptr.hbm [resolvable:$true] %s630
          %633 = dma.vmem_to_hbm [thread:$0]  %s629, 128, %s631, %s616
        $region56: #{tpu_custom_call.1} parent=35 // pred_fallthru
          _
      $region36: #{tpu_custom_call.1} parent=5 // pred_fallthru
        _
      %p634 = scmp.le.s32.totalorder 2, %s22
      // Predicated region
      $region57: #{tpu_custom_call.1} parent=5 // pred_check
        %p635 = pneg %p634
      $region58: #{tpu_custom_call.1} parent=5 // pred_check_branch
        %637 = sbr.rel (%p635) target = $region60
      $region59: #{tpu_custom_call.1} parent=5 // pred_region
        %s638 = ssub.s32 %s22, 2
        // Predicated region
        $region61: #{tpu_custom_call.1} parent=59 // pred_check
          %p639 = pneg %p155
        $region62: #{tpu_custom_call.1} parent=59 // pred_check_branch
          %641 = sbr.rel (%p639) target = $region64
        $region63: #{tpu_custom_call.1} parent=59 // pred_region
          %s642 = sand.u32 %s140, 1
          %s643 = scalar_lea.sflag [#allocation4], %s642
          %s644 = sand.u32 %s140, 1
          %s645 = smul.addr %s644, 8
          %s646 = scalar_lea.vmem [#allocation10], %s645
          %648 = dma.done %s643, 128
        $region64: #{tpu_custom_call.1} parent=59 // pred_fallthru
          _
      $region60: #{tpu_custom_call.1} parent=5 // pred_fallthru
        _
    $region6: #{tpu_custom_call.1} parent=1 // loop_footer
      %s26 = sadd.s32 1, %s22
    $region7: #{tpu_custom_call.1} parent=1 // loop_footer_branch
      %21 = sbr.rel target = $region3
    $region8: #{tpu_custom_call.1} parent=1 // loop_exit
      _
    %649 = vsyncpa [#allocation3], 1
    %s650 = scalar_lea.sflag [#allocation3], 1
    %651 = vsyncpa %s650, 1
    %652 = vsyncpa [#allocation6], 1
    %s653 = scalar_lea.sflag [#allocation6], 1
    %654 = vsyncpa %s653, 1
    %655 = vsyncpa [#allocation9], 1
    %s656 = scalar_lea.sflag [#allocation9], 1
    %657 = vsyncpa %s656, 1
    %658 = vsyncpa [#allocation4], 1
    %s659 = scalar_lea.sflag [#allocation4], 1
    %660 = vsyncpa %s659, 1

</llo_original>
